<compile_context>
chip_gen: v5e
topology: v5e:2x2
jax: 0.10.0
libtpu: 0.0.40
codegen_flags: <defaults>
</compile_context>

<pallas_src>
import functools

import jax
import jax.numpy as jnp
from jax.experimental import pallas as pl
from jax.experimental.pallas import tpu as pltpu

_LANES = 128
_SUBLANES = 8
_MIN_TILE = _LANES * _SUBLANES  # 1024 batch samples = one fully dense block


def _round_up(n, m):
    return ((n + m - 1) // m) * m


def _layer(h_planes, w_ref, b_ref):
    """One linear+sigmoid layer as unrolled scalar-weight VPU MACs.

    h_planes: list of `in_dim` arrays, each (tbs, 128) f32 (one feature plane).
    w_ref:    (out_dim, in_dim) f32 SMEM ref.
    b_ref:    (out_dim,) f32 SMEM ref.
    Returns `out_dim` planes of shape (tbs, 128) f32.
    """
    out_dim, in_dim = w_ref.shape
    new_planes = []
    for j in range(out_dim):
        acc = h_planes[0] * w_ref[j, 0]
        for k in range(1, in_dim):
            acc = acc + h_planes[k] * w_ref[j, k]
        new_planes.append(jax.nn.sigmoid(acc + b_ref[j]))
    return new_planes


def _mlp_kernel(x_ref,
                w1_ref, b1_ref,
                w2_ref, b2_ref,
                w3_ref, b3_ref,
                w4_ref, b4_ref,
                o_ref):
    # x_ref: (8, tbs, 128) VMEM tile (feature planes, batch on sublane x lane).
    # o_ref: (tbs, 128) VMEM tile (single output feature, lane-dense).
    h = [x_ref[k] for k in range(x_ref.shape[0])]
    for w_ref, b_ref in ((w1_ref, b1_ref), (w2_ref, b2_ref),
                         (w3_ref, b3_ref), (w4_ref, b4_ref)):
        h = _layer(h, w_ref, b_ref)
    o_ref[...] = h[0]  # final layer has exactly one output feature


@functools.partial(jax.jit, static_argnames=("tile_batch",))
def mlp_forward(x, params, *, tile_batch=32768):
    """x: (B, 8) f32; params: w{i}: (out, in), b{i}: (out,) like torch.nn.Linear."""
    B, F = x.shape
    assert F == 8

    # Batch tile (in samples): multiple of 8*128 so every block is (8, tbs, 128)
    # with tbs a multiple of 8 (sublane/lane tiling constraint), clamped for small B.
    tb = max(_MIN_TILE, min(int(tile_batch), _round_up(B, _MIN_TILE)))
    tb = _round_up(tb, _MIN_TILE)
    Bp = _round_up(B, tb)
    tbs = tb // _LANES
    grid = (Bp // tb,)

    xp = jnp.pad(x, ((0, Bp - B), (0, 0)))
    x3 = xp.T.reshape(F, Bp // _LANES, _LANES)  # lane-dense: batch on (sublane, lane)

    smem = pl.BlockSpec(memory_space=pltpu.MemorySpace.SMEM)

    out3 = pl.pallas_call(
        _mlp_kernel,
        out_shape=jax.ShapeDtypeStruct((Bp // _LANES, _LANES), jnp.float32),
        grid=grid,
        in_specs=[
            pl.BlockSpec((F, tbs, _LANES), lambda i: (0, i, 0)),
            smem, smem,  # w1, b1  (resident, scalar path)
            smem, smem,  # w2, b2
            smem, smem,  # w3, b3
            smem, smem,  # w4, b4
        ],
        out_specs=pl.BlockSpec((tbs, _LANES), lambda i: (i, 0)),
        compiler_params=pltpu.CompilerParams(
            dimension_semantics=("parallel",),
            vmem_limit_bytes=32 * 1024 * 1024,
        ),
    )(x3,
      params["w1"], params["b1"],
      params["w2"], params["b2"],
      params["w3"], params["b3"],
      params["w4"], params["b4"])

    return out3.reshape(Bp)[:B].reshape(B, 1)


def init_params(key):
    """Deterministic init mirroring torch.nn.Linear: w (out, in), b (out,)."""
    dims = [(6, 8), (4, 6), (2, 4), (1, 2)]  # (out_features, in_features)
    params = {}
    for i, (fan_out, fan_in) in enumerate(dims, start=1):
        key, kw, kb = jax.random.split(key, 3)
        bound = 1.0 / float(fan_in) ** 0.5
        params[f"w{i}"] = jax.random.uniform(
            kw, (fan_out, fan_in), jnp.float32, -bound, bound)
        params[f"b{i}"] = jax.random.uniform(
            kb, (fan_out,), jnp.float32, -bound, bound)
    return params


def _reference(x, params):
    h = x
    for i in range(1, 5):
        h = jax.nn.sigmoid(h @ params[f"w{i}"].T + params[f"b{i}"])
    return h


if __name__ == "__main__":
    key = jax.random.PRNGKey(0)
    key, kx = jax.random.split(key)
    params = init_params(key)

    # (B, tile_batch): small-shape check, plus a padded multi-tile grid check.
    for B, tb in ((8, 32768), (2050, 1024)):
        x = jax.random.normal(jax.random.fold_in(kx, B), (B, 8), jnp.float32)
        out = jax.block_until_ready(mlp_forward(x, params, tile_batch=tb))
        ref = _reference(x, params)
        assert out.shape == (B, 1)
        assert jnp.allclose(out, ref, atol=1e-5, rtol=1e-5), f"mismatch at B={B}"

    print("KERNEL_OK")
</pallas_src>

<mosaic_0001>
module attributes {stable_mosaic.version = 11 : i64} {
  func.func @_mlp_kernel(%arg0: i32, %arg1: memref<8x8x128xf32, #tpu.memory_space<vmem>>, %arg2: memref<6x8xf32, #tpu.memory_space<smem>>, %arg3: memref<6xf32, #tpu.memory_space<smem>>, %arg4: memref<4x6xf32, #tpu.memory_space<smem>>, %arg5: memref<4xf32, #tpu.memory_space<smem>>, %arg6: memref<2x4xf32, #tpu.memory_space<smem>>, %arg7: memref<2xf32, #tpu.memory_space<smem>>, %arg8: memref<1x2xf32, #tpu.memory_space<smem>>, %arg9: memref<1xf32, #tpu.memory_space<smem>>, %arg10: memref<8x128xf32, #tpu.memory_space<vmem>>) attributes {dimension_semantics = [#tpu.dimension_semantics<parallel>], iteration_bounds = array<i64: 1>, scalar_prefetch = 0 : i64, scratch_operands = 0 : i64, tpu.core_type = #tpu.core_type<tc>, window_params = [{transform_indices = @transform_0, window_bounds = array<i64: 8, 8, 128>}, {transform_indices = @transform_1, window_bounds = array<i64: 6, 8>}, {transform_indices = @transform_2, window_bounds = array<i64: 6>}, {transform_indices = @transform_3, window_bounds = array<i64: 4, 6>}, {transform_indices = @transform_4, window_bounds = array<i64: 4>}, {transform_indices = @transform_5, window_bounds = array<i64: 2, 4>}, {transform_indices = @transform_6, window_bounds = array<i64: 2>}, {transform_indices = @transform_7, window_bounds = array<i64: 1, 2>}, {transform_indices = @transform_8, window_bounds = array<i64: 1>}, {transform_indices = @transform_9, window_bounds = array<i64: 8, 128>}]} {
    %c0 = arith.constant 0 : index
    %c0_0 = arith.constant 0 : index
    %c0_1 = arith.constant 0 : index
    %0 = vector.load %arg1[%c0, %c0_0, %c0_1] : memref<8x8x128xf32, #tpu.memory_space<vmem>>, vector<1x8x128xf32>
    %1 = vector.shape_cast %0 : vector<1x8x128xf32> to vector<8x128xf32>
    %c1 = arith.constant 1 : index
    %c0_2 = arith.constant 0 : index
    %c0_3 = arith.constant 0 : index
    %2 = vector.load %arg1[%c1, %c0_2, %c0_3] : memref<8x8x128xf32, #tpu.memory_space<vmem>>, vector<1x8x128xf32>
    %3 = vector.shape_cast %2 : vector<1x8x128xf32> to vector<8x128xf32>
    %c2 = arith.constant 2 : index
    %c0_4 = arith.constant 0 : index
    %c0_5 = arith.constant 0 : index
    %4 = vector.load %arg1[%c2, %c0_4, %c0_5] : memref<8x8x128xf32, #tpu.memory_space<vmem>>, vector<1x8x128xf32>
    %5 = vector.shape_cast %4 : vector<1x8x128xf32> to vector<8x128xf32>
    %c3 = arith.constant 3 : index
    %c0_6 = arith.constant 0 : index
    %c0_7 = arith.constant 0 : index
    %6 = vector.load %arg1[%c3, %c0_6, %c0_7] : memref<8x8x128xf32, #tpu.memory_space<vmem>>, vector<1x8x128xf32>
    %7 = vector.shape_cast %6 : vector<1x8x128xf32> to vector<8x128xf32>
    %c4 = arith.constant 4 : index
    %c0_8 = arith.constant 0 : index
    %c0_9 = arith.constant 0 : index
    %8 = vector.load %arg1[%c4, %c0_8, %c0_9] : memref<8x8x128xf32, #tpu.memory_space<vmem>>, vector<1x8x128xf32>
    %9 = vector.shape_cast %8 : vector<1x8x128xf32> to vector<8x128xf32>
    %c5 = arith.constant 5 : index
    %c0_10 = arith.constant 0 : index
    %c0_11 = arith.constant 0 : index
    %10 = vector.load %arg1[%c5, %c0_10, %c0_11] : memref<8x8x128xf32, #tpu.memory_space<vmem>>, vector<1x8x128xf32>
    %11 = vector.shape_cast %10 : vector<1x8x128xf32> to vector<8x128xf32>
    %c6 = arith.constant 6 : index
    %c0_12 = arith.constant 0 : index
    %c0_13 = arith.constant 0 : index
    %12 = vector.load %arg1[%c6, %c0_12, %c0_13] : memref<8x8x128xf32, #tpu.memory_space<vmem>>, vector<1x8x128xf32>
    %13 = vector.shape_cast %12 : vector<1x8x128xf32> to vector<8x128xf32>
    %c7 = arith.constant 7 : index
    %c0_14 = arith.constant 0 : index
    %c0_15 = arith.constant 0 : index
    %14 = vector.load %arg1[%c7, %c0_14, %c0_15] : memref<8x8x128xf32, #tpu.memory_space<vmem>>, vector<1x8x128xf32>
    %15 = vector.shape_cast %14 : vector<1x8x128xf32> to vector<8x128xf32>
    %c0_16 = arith.constant 0 : index
    %c0_17 = arith.constant 0 : index
    %16 = memref.load %arg2[%c0_16, %c0_17] : memref<6x8xf32, #tpu.memory_space<smem>>
    %17 = vector.broadcast %16 : f32 to vector<8x128xf32>
    %18 = arith.mulf %1, %17 : vector<8x128xf32>
    %c0_18 = arith.constant 0 : index
    %c1_19 = arith.constant 1 : index
    %19 = memref.load %arg2[%c0_18, %c1_19] : memref<6x8xf32, #tpu.memory_space<smem>>
    %20 = vector.broadcast %19 : f32 to vector<8x128xf32>
    %21 = arith.mulf %3, %20 : vector<8x128xf32>
    %22 = arith.addf %18, %21 : vector<8x128xf32>
    %c0_20 = arith.constant 0 : index
    %c2_21 = arith.constant 2 : index
    %23 = memref.load %arg2[%c0_20, %c2_21] : memref<6x8xf32, #tpu.memory_space<smem>>
    %24 = vector.broadcast %23 : f32 to vector<8x128xf32>
    %25 = arith.mulf %5, %24 : vector<8x128xf32>
    %26 = arith.addf %22, %25 : vector<8x128xf32>
    %c0_22 = arith.constant 0 : index
    %c3_23 = arith.constant 3 : index
    %27 = memref.load %arg2[%c0_22, %c3_23] : memref<6x8xf32, #tpu.memory_space<smem>>
    %28 = vector.broadcast %27 : f32 to vector<8x128xf32>
    %29 = arith.mulf %7, %28 : vector<8x128xf32>
    %30 = arith.addf %26, %29 : vector<8x128xf32>
    %c0_24 = arith.constant 0 : index
    %c4_25 = arith.constant 4 : index
    %31 = memref.load %arg2[%c0_24, %c4_25] : memref<6x8xf32, #tpu.memory_space<smem>>
    %32 = vector.broadcast %31 : f32 to vector<8x128xf32>
    %33 = arith.mulf %9, %32 : vector<8x128xf32>
    %34 = arith.addf %30, %33 : vector<8x128xf32>
    %c0_26 = arith.constant 0 : index
    %c5_27 = arith.constant 5 : index
    %35 = memref.load %arg2[%c0_26, %c5_27] : memref<6x8xf32, #tpu.memory_space<smem>>
    %36 = vector.broadcast %35 : f32 to vector<8x128xf32>
    %37 = arith.mulf %11, %36 : vector<8x128xf32>
    %38 = arith.addf %34, %37 : vector<8x128xf32>
    %c0_28 = arith.constant 0 : index
    %c6_29 = arith.constant 6 : index
    %39 = memref.load %arg2[%c0_28, %c6_29] : memref<6x8xf32, #tpu.memory_space<smem>>
    %40 = vector.broadcast %39 : f32 to vector<8x128xf32>
    %41 = arith.mulf %13, %40 : vector<8x128xf32>
    %42 = arith.addf %38, %41 : vector<8x128xf32>
    %c0_30 = arith.constant 0 : index
    %c7_31 = arith.constant 7 : index
    %43 = memref.load %arg2[%c0_30, %c7_31] : memref<6x8xf32, #tpu.memory_space<smem>>
    %44 = vector.broadcast %43 : f32 to vector<8x128xf32>
    %45 = arith.mulf %15, %44 : vector<8x128xf32>
    %46 = arith.addf %42, %45 : vector<8x128xf32>
    %c0_32 = arith.constant 0 : index
    %47 = memref.load %arg3[%c0_32] : memref<6xf32, #tpu.memory_space<smem>>
    %48 = vector.broadcast %47 : f32 to vector<8x128xf32>
    %49 = arith.addf %46, %48 : vector<8x128xf32>
    %50 = arith.negf %49 : vector<8x128xf32>
    %51 = math.exp %50 : vector<8x128xf32>
    %cst = arith.constant 1.000000e+00 : f32
    %52 = vector.broadcast %cst : f32 to vector<8x128xf32>
    %53 = arith.addf %52, %51 : vector<8x128xf32>
    %54 = arith.divf %52, %53 : vector<8x128xf32>
    %c1_33 = arith.constant 1 : index
    %c0_34 = arith.constant 0 : index
    %55 = memref.load %arg2[%c1_33, %c0_34] : memref<6x8xf32, #tpu.memory_space<smem>>
    %56 = vector.broadcast %55 : f32 to vector<8x128xf32>
    %57 = arith.mulf %1, %56 : vector<8x128xf32>
    %c1_35 = arith.constant 1 : index
    %c1_36 = arith.constant 1 : index
    %58 = memref.load %arg2[%c1_35, %c1_36] : memref<6x8xf32, #tpu.memory_space<smem>>
    %59 = vector.broadcast %58 : f32 to vector<8x128xf32>
    %60 = arith.mulf %3, %59 : vector<8x128xf32>
    %61 = arith.addf %57, %60 : vector<8x128xf32>
    %c1_37 = arith.constant 1 : index
    %c2_38 = arith.constant 2 : index
    %62 = memref.load %arg2[%c1_37, %c2_38] : memref<6x8xf32, #tpu.memory_space<smem>>
    %63 = vector.broadcast %62 : f32 to vector<8x128xf32>
    %64 = arith.mulf %5, %63 : vector<8x128xf32>
    %65 = arith.addf %61, %64 : vector<8x128xf32>
    %c1_39 = arith.constant 1 : index
    %c3_40 = arith.constant 3 : index
    %66 = memref.load %arg2[%c1_39, %c3_40] : memref<6x8xf32, #tpu.memory_space<smem>>
    %67 = vector.broadcast %66 : f32 to vector<8x128xf32>
    %68 = arith.mulf %7, %67 : vector<8x128xf32>
    %69 = arith.addf %65, %68 : vector<8x128xf32>
    %c1_41 = arith.constant 1 : index
    %c4_42 = arith.constant 4 : index
    %70 = memref.load %arg2[%c1_41, %c4_42] : memref<6x8xf32, #tpu.memory_space<smem>>
    %71 = vector.broadcast %70 : f32 to vector<8x128xf32>
    %72 = arith.mulf %9, %71 : vector<8x128xf32>
    %73 = arith.addf %69, %72 : vector<8x128xf32>
    %c1_43 = arith.constant 1 : index
    %c5_44 = arith.constant 5 : index
    %74 = memref.load %arg2[%c1_43, %c5_44] : memref<6x8xf32, #tpu.memory_space<smem>>
    %75 = vector.broadcast %74 : f32 to vector<8x128xf32>
    %76 = arith.mulf %11, %75 : vector<8x128xf32>
    %77 = arith.addf %73, %76 : vector<8x128xf32>
    %c1_45 = arith.constant 1 : index
    %c6_46 = arith.constant 6 : index
    %78 = memref.load %arg2[%c1_45, %c6_46] : memref<6x8xf32, #tpu.memory_space<smem>>
    %79 = vector.broadcast %78 : f32 to vector<8x128xf32>
    %80 = arith.mulf %13, %79 : vector<8x128xf32>
    %81 = arith.addf %77, %80 : vector<8x128xf32>
    %c1_47 = arith.constant 1 : index
    %c7_48 = arith.constant 7 : index
    %82 = memref.load %arg2[%c1_47, %c7_48] : memref<6x8xf32, #tpu.memory_space<smem>>
    %83 = vector.broadcast %82 : f32 to vector<8x128xf32>
    %84 = arith.mulf %15, %83 : vector<8x128xf32>
    %85 = arith.addf %81, %84 : vector<8x128xf32>
    %c1_49 = arith.constant 1 : index
    %86 = memref.load %arg3[%c1_49] : memref<6xf32, #tpu.memory_space<smem>>
    %87 = vector.broadcast %86 : f32 to vector<8x128xf32>
    %88 = arith.addf %85, %87 : vector<8x128xf32>
    %89 = arith.negf %88 : vector<8x128xf32>
    %90 = math.exp %89 : vector<8x128xf32>
    %cst_50 = arith.constant 1.000000e+00 : f32
    %91 = vector.broadcast %cst_50 : f32 to vector<8x128xf32>
    %92 = arith.addf %91, %90 : vector<8x128xf32>
    %93 = arith.divf %91, %92 : vector<8x128xf32>
    %c2_51 = arith.constant 2 : index
    %c0_52 = arith.constant 0 : index
    %94 = memref.load %arg2[%c2_51, %c0_52] : memref<6x8xf32, #tpu.memory_space<smem>>
    %95 = vector.broadcast %94 : f32 to vector<8x128xf32>
    %96 = arith.mulf %1, %95 : vector<8x128xf32>
    %c2_53 = arith.constant 2 : index
    %c1_54 = arith.constant 1 : index
    %97 = memref.load %arg2[%c2_53, %c1_54] : memref<6x8xf32, #tpu.memory_space<smem>>
    %98 = vector.broadcast %97 : f32 to vector<8x128xf32>
    %99 = arith.mulf %3, %98 : vector<8x128xf32>
    %100 = arith.addf %96, %99 : vector<8x128xf32>
    %c2_55 = arith.constant 2 : index
    %c2_56 = arith.constant 2 : index
    %101 = memref.load %arg2[%c2_55, %c2_56] : memref<6x8xf32, #tpu.memory_space<smem>>
    %102 = vector.broadcast %101 : f32 to vector<8x128xf32>
    %103 = arith.mulf %5, %102 : vector<8x128xf32>
    %104 = arith.addf %100, %103 : vector<8x128xf32>
    %c2_57 = arith.constant 2 : index
    %c3_58 = arith.constant 3 : index
    %105 = memref.load %arg2[%c2_57, %c3_58] : memref<6x8xf32, #tpu.memory_space<smem>>
    %106 = vector.broadcast %105 : f32 to vector<8x128xf32>
    %107 = arith.mulf %7, %106 : vector<8x128xf32>
    %108 = arith.addf %104, %107 : vector<8x128xf32>
    %c2_59 = arith.constant 2 : index
    %c4_60 = arith.constant 4 : index
    %109 = memref.load %arg2[%c2_59, %c4_60] : memref<6x8xf32, #tpu.memory_space<smem>>
    %110 = vector.broadcast %109 : f32 to vector<8x128xf32>
    %111 = arith.mulf %9, %110 : vector<8x128xf32>
    %112 = arith.addf %108, %111 : vector<8x128xf32>
    %c2_61 = arith.constant 2 : index
    %c5_62 = arith.constant 5 : index
    %113 = memref.load %arg2[%c2_61, %c5_62] : memref<6x8xf32, #tpu.memory_space<smem>>
    %114 = vector.broadcast %113 : f32 to vector<8x128xf32>
    %115 = arith.mulf %11, %114 : vector<8x128xf32>
    %116 = arith.addf %112, %115 : vector<8x128xf32>
    %c2_63 = arith.constant 2 : index
    %c6_64 = arith.constant 6 : index
    %117 = memref.load %arg2[%c2_63, %c6_64] : memref<6x8xf32, #tpu.memory_space<smem>>
    %118 = vector.broadcast %117 : f32 to vector<8x128xf32>
    %119 = arith.mulf %13, %118 : vector<8x128xf32>
    %120 = arith.addf %116, %119 : vector<8x128xf32>
    %c2_65 = arith.constant 2 : index
    %c7_66 = arith.constant 7 : index
    %121 = memref.load %arg2[%c2_65, %c7_66] : memref<6x8xf32, #tpu.memory_space<smem>>
    %122 = vector.broadcast %121 : f32 to vector<8x128xf32>
    %123 = arith.mulf %15, %122 : vector<8x128xf32>
    %124 = arith.addf %120, %123 : vector<8x128xf32>
    %c2_67 = arith.constant 2 : index
    %125 = memref.load %arg3[%c2_67] : memref<6xf32, #tpu.memory_space<smem>>
    %126 = vector.broadcast %125 : f32 to vector<8x128xf32>
    %127 = arith.addf %124, %126 : vector<8x128xf32>
    %128 = arith.negf %127 : vector<8x128xf32>
    %129 = math.exp %128 : vector<8x128xf32>
    %cst_68 = arith.constant 1.000000e+00 : f32
    %130 = vector.broadcast %cst_68 : f32 to vector<8x128xf32>
    %131 = arith.addf %130, %129 : vector<8x128xf32>
    %132 = arith.divf %130, %131 : vector<8x128xf32>
    %c3_69 = arith.constant 3 : index
    %c0_70 = arith.constant 0 : index
    %133 = memref.load %arg2[%c3_69, %c0_70] : memref<6x8xf32, #tpu.memory_space<smem>>
    %134 = vector.broadcast %133 : f32 to vector<8x128xf32>
    %135 = arith.mulf %1, %134 : vector<8x128xf32>
    %c3_71 = arith.constant 3 : index
    %c1_72 = arith.constant 1 : index
    %136 = memref.load %arg2[%c3_71, %c1_72] : memref<6x8xf32, #tpu.memory_space<smem>>
    %137 = vector.broadcast %136 : f32 to vector<8x128xf32>
    %138 = arith.mulf %3, %137 : vector<8x128xf32>
    %139 = arith.addf %135, %138 : vector<8x128xf32>
    %c3_73 = arith.constant 3 : index
    %c2_74 = arith.constant 2 : index
    %140 = memref.load %arg2[%c3_73, %c2_74] : memref<6x8xf32, #tpu.memory_space<smem>>
    %141 = vector.broadcast %140 : f32 to vector<8x128xf32>
    %142 = arith.mulf %5, %141 : vector<8x128xf32>
    %143 = arith.addf %139, %142 : vector<8x128xf32>
    %c3_75 = arith.constant 3 : index
    %c3_76 = arith.constant 3 : index
    %144 = memref.load %arg2[%c3_75, %c3_76] : memref<6x8xf32, #tpu.memory_space<smem>>
    %145 = vector.broadcast %144 : f32 to vector<8x128xf32>
    %146 = arith.mulf %7, %145 : vector<8x128xf32>
    %147 = arith.addf %143, %146 : vector<8x128xf32>
    %c3_77 = arith.constant 3 : index
    %c4_78 = arith.constant 4 : index
    %148 = memref.load %arg2[%c3_77, %c4_78] : memref<6x8xf32, #tpu.memory_space<smem>>
    %149 = vector.broadcast %148 : f32 to vector<8x128xf32>
    %150 = arith.mulf %9, %149 : vector<8x128xf32>
    %151 = arith.addf %147, %150 : vector<8x128xf32>
    %c3_79 = arith.constant 3 : index
    %c5_80 = arith.constant 5 : index
    %152 = memref.load %arg2[%c3_79, %c5_80] : memref<6x8xf32, #tpu.memory_space<smem>>
    %153 = vector.broadcast %152 : f32 to vector<8x128xf32>
    %154 = arith.mulf %11, %153 : vector<8x128xf32>
    %155 = arith.addf %151, %154 : vector<8x128xf32>
    %c3_81 = arith.constant 3 : index
    %c6_82 = arith.constant 6 : index
    %156 = memref.load %arg2[%c3_81, %c6_82] : memref<6x8xf32, #tpu.memory_space<smem>>
    %157 = vector.broadcast %156 : f32 to vector<8x128xf32>
    %158 = arith.mulf %13, %157 : vector<8x128xf32>
    %159 = arith.addf %155, %158 : vector<8x128xf32>
    %c3_83 = arith.constant 3 : index
    %c7_84 = arith.constant 7 : index
    %160 = memref.load %arg2[%c3_83, %c7_84] : memref<6x8xf32, #tpu.memory_space<smem>>
    %161 = vector.broadcast %160 : f32 to vector<8x128xf32>
    %162 = arith.mulf %15, %161 : vector<8x128xf32>
    %163 = arith.addf %159, %162 : vector<8x128xf32>
    %c3_85 = arith.constant 3 : index
    %164 = memref.load %arg3[%c3_85] : memref<6xf32, #tpu.memory_space<smem>>
    %165 = vector.broadcast %164 : f32 to vector<8x128xf32>
    %166 = arith.addf %163, %165 : vector<8x128xf32>
    %167 = arith.negf %166 : vector<8x128xf32>
    %168 = math.exp %167 : vector<8x128xf32>
    %cst_86 = arith.constant 1.000000e+00 : f32
    %169 = vector.broadcast %cst_86 : f32 to vector<8x128xf32>
    %170 = arith.addf %169, %168 : vector<8x128xf32>
    %171 = arith.divf %169, %170 : vector<8x128xf32>
    %c4_87 = arith.constant 4 : index
    %c0_88 = arith.constant 0 : index
    %172 = memref.load %arg2[%c4_87, %c0_88] : memref<6x8xf32, #tpu.memory_space<smem>>
    %173 = vector.broadcast %172 : f32 to vector<8x128xf32>
    %174 = arith.mulf %1, %173 : vector<8x128xf32>
    %c4_89 = arith.constant 4 : index
    %c1_90 = arith.constant 1 : index
    %175 = memref.load %arg2[%c4_89, %c1_90] : memref<6x8xf32, #tpu.memory_space<smem>>
    %176 = vector.broadcast %175 : f32 to vector<8x128xf32>
    %177 = arith.mulf %3, %176 : vector<8x128xf32>
    %178 = arith.addf %174, %177 : vector<8x128xf32>
    %c4_91 = arith.constant 4 : index
    %c2_92 = arith.constant 2 : index
    %179 = memref.load %arg2[%c4_91, %c2_92] : memref<6x8xf32, #tpu.memory_space<smem>>
    %180 = vector.broadcast %179 : f32 to vector<8x128xf32>
    %181 = arith.mulf %5, %180 : vector<8x128xf32>
    %182 = arith.addf %178, %181 : vector<8x128xf32>
    %c4_93 = arith.constant 4 : index
    %c3_94 = arith.constant 3 : index
    %183 = memref.load %arg2[%c4_93, %c3_94] : memref<6x8xf32, #tpu.memory_space<smem>>
    %184 = vector.broadcast %183 : f32 to vector<8x128xf32>
    %185 = arith.mulf %7, %184 : vector<8x128xf32>
    %186 = arith.addf %182, %185 : vector<8x128xf32>
    %c4_95 = arith.constant 4 : index
    %c4_96 = arith.constant 4 : index
    %187 = memref.load %arg2[%c4_95, %c4_96] : memref<6x8xf32, #tpu.memory_space<smem>>
    %188 = vector.broadcast %187 : f32 to vector<8x128xf32>
    %189 = arith.mulf %9, %188 : vector<8x128xf32>
    %190 = arith.addf %186, %189 : vector<8x128xf32>
    %c4_97 = arith.constant 4 : index
    %c5_98 = arith.constant 5 : index
    %191 = memref.load %arg2[%c4_97, %c5_98] : memref<6x8xf32, #tpu.memory_space<smem>>
    %192 = vector.broadcast %191 : f32 to vector<8x128xf32>
    %193 = arith.mulf %11, %192 : vector<8x128xf32>
    %194 = arith.addf %190, %193 : vector<8x128xf32>
    %c4_99 = arith.constant 4 : index
    %c6_100 = arith.constant 6 : index
    %195 = memref.load %arg2[%c4_99, %c6_100] : memref<6x8xf32, #tpu.memory_space<smem>>
    %196 = vector.broadcast %195 : f32 to vector<8x128xf32>
    %197 = arith.mulf %13, %196 : vector<8x128xf32>
    %198 = arith.addf %194, %197 : vector<8x128xf32>
    %c4_101 = arith.constant 4 : index
    %c7_102 = arith.constant 7 : index
    %199 = memref.load %arg2[%c4_101, %c7_102] : memref<6x8xf32, #tpu.memory_space<smem>>
    %200 = vector.broadcast %199 : f32 to vector<8x128xf32>
    %201 = arith.mulf %15, %200 : vector<8x128xf32>
    %202 = arith.addf %198, %201 : vector<8x128xf32>
    %c4_103 = arith.constant 4 : index
    %203 = memref.load %arg3[%c4_103] : memref<6xf32, #tpu.memory_space<smem>>
    %204 = vector.broadcast %203 : f32 to vector<8x128xf32>
    %205 = arith.addf %202, %204 : vector<8x128xf32>
    %206 = arith.negf %205 : vector<8x128xf32>
    %207 = math.exp %206 : vector<8x128xf32>
    %cst_104 = arith.constant 1.000000e+00 : f32
    %208 = vector.broadcast %cst_104 : f32 to vector<8x128xf32>
    %209 = arith.addf %208, %207 : vector<8x128xf32>
    %210 = arith.divf %208, %209 : vector<8x128xf32>
    %c5_105 = arith.constant 5 : index
    %c0_106 = arith.constant 0 : index
    %211 = memref.load %arg2[%c5_105, %c0_106] : memref<6x8xf32, #tpu.memory_space<smem>>
    %212 = vector.broadcast %211 : f32 to vector<8x128xf32>
    %213 = arith.mulf %1, %212 : vector<8x128xf32>
    %c5_107 = arith.constant 5 : index
    %c1_108 = arith.constant 1 : index
    %214 = memref.load %arg2[%c5_107, %c1_108] : memref<6x8xf32, #tpu.memory_space<smem>>
    %215 = vector.broadcast %214 : f32 to vector<8x128xf32>
    %216 = arith.mulf %3, %215 : vector<8x128xf32>
    %217 = arith.addf %213, %216 : vector<8x128xf32>
    %c5_109 = arith.constant 5 : index
    %c2_110 = arith.constant 2 : index
    %218 = memref.load %arg2[%c5_109, %c2_110] : memref<6x8xf32, #tpu.memory_space<smem>>
    %219 = vector.broadcast %218 : f32 to vector<8x128xf32>
    %220 = arith.mulf %5, %219 : vector<8x128xf32>
    %221 = arith.addf %217, %220 : vector<8x128xf32>
    %c5_111 = arith.constant 5 : index
    %c3_112 = arith.constant 3 : index
    %222 = memref.load %arg2[%c5_111, %c3_112] : memref<6x8xf32, #tpu.memory_space<smem>>
    %223 = vector.broadcast %222 : f32 to vector<8x128xf32>
    %224 = arith.mulf %7, %223 : vector<8x128xf32>
    %225 = arith.addf %221, %224 : vector<8x128xf32>
    %c5_113 = arith.constant 5 : index
    %c4_114 = arith.constant 4 : index
    %226 = memref.load %arg2[%c5_113, %c4_114] : memref<6x8xf32, #tpu.memory_space<smem>>
    %227 = vector.broadcast %226 : f32 to vector<8x128xf32>
    %228 = arith.mulf %9, %227 : vector<8x128xf32>
    %229 = arith.addf %225, %228 : vector<8x128xf32>
    %c5_115 = arith.constant 5 : index
    %c5_116 = arith.constant 5 : index
    %230 = memref.load %arg2[%c5_115, %c5_116] : memref<6x8xf32, #tpu.memory_space<smem>>
    %231 = vector.broadcast %230 : f32 to vector<8x128xf32>
    %232 = arith.mulf %11, %231 : vector<8x128xf32>
    %233 = arith.addf %229, %232 : vector<8x128xf32>
    %c5_117 = arith.constant 5 : index
    %c6_118 = arith.constant 6 : index
    %234 = memref.load %arg2[%c5_117, %c6_118] : memref<6x8xf32, #tpu.memory_space<smem>>
    %235 = vector.broadcast %234 : f32 to vector<8x128xf32>
    %236 = arith.mulf %13, %235 : vector<8x128xf32>
    %237 = arith.addf %233, %236 : vector<8x128xf32>
    %c5_119 = arith.constant 5 : index
    %c7_120 = arith.constant 7 : index
    %238 = memref.load %arg2[%c5_119, %c7_120] : memref<6x8xf32, #tpu.memory_space<smem>>
    %239 = vector.broadcast %238 : f32 to vector<8x128xf32>
    %240 = arith.mulf %15, %239 : vector<8x128xf32>
    %241 = arith.addf %237, %240 : vector<8x128xf32>
    %c5_121 = arith.constant 5 : index
    %242 = memref.load %arg3[%c5_121] : memref<6xf32, #tpu.memory_space<smem>>
    %243 = vector.broadcast %242 : f32 to vector<8x128xf32>
    %244 = arith.addf %241, %243 : vector<8x128xf32>
    %245 = arith.negf %244 : vector<8x128xf32>
    %246 = math.exp %245 : vector<8x128xf32>
    %cst_122 = arith.constant 1.000000e+00 : f32
    %247 = vector.broadcast %cst_122 : f32 to vector<8x128xf32>
    %248 = arith.addf %247, %246 : vector<8x128xf32>
    %249 = arith.divf %247, %248 : vector<8x128xf32>
    %c0_123 = arith.constant 0 : index
    %c0_124 = arith.constant 0 : index
    %250 = memref.load %arg4[%c0_123, %c0_124] : memref<4x6xf32, #tpu.memory_space<smem>>
    %251 = vector.broadcast %250 : f32 to vector<8x128xf32>
    %252 = arith.mulf %54, %251 : vector<8x128xf32>
    %c0_125 = arith.constant 0 : index
    %c1_126 = arith.constant 1 : index
    %253 = memref.load %arg4[%c0_125, %c1_126] : memref<4x6xf32, #tpu.memory_space<smem>>
    %254 = vector.broadcast %253 : f32 to vector<8x128xf32>
    %255 = arith.mulf %93, %254 : vector<8x128xf32>
    %256 = arith.addf %252, %255 : vector<8x128xf32>
    %c0_127 = arith.constant 0 : index
    %c2_128 = arith.constant 2 : index
    %257 = memref.load %arg4[%c0_127, %c2_128] : memref<4x6xf32, #tpu.memory_space<smem>>
    %258 = vector.broadcast %257 : f32 to vector<8x128xf32>
    %259 = arith.mulf %132, %258 : vector<8x128xf32>
    %260 = arith.addf %256, %259 : vector<8x128xf32>
    %c0_129 = arith.constant 0 : index
    %c3_130 = arith.constant 3 : index
    %261 = memref.load %arg4[%c0_129, %c3_130] : memref<4x6xf32, #tpu.memory_space<smem>>
    %262 = vector.broadcast %261 : f32 to vector<8x128xf32>
    %263 = arith.mulf %171, %262 : vector<8x128xf32>
    %264 = arith.addf %260, %263 : vector<8x128xf32>
    %c0_131 = arith.constant 0 : index
    %c4_132 = arith.constant 4 : index
    %265 = memref.load %arg4[%c0_131, %c4_132] : memref<4x6xf32, #tpu.memory_space<smem>>
    %266 = vector.broadcast %265 : f32 to vector<8x128xf32>
    %267 = arith.mulf %210, %266 : vector<8x128xf32>
    %268 = arith.addf %264, %267 : vector<8x128xf32>
    %c0_133 = arith.constant 0 : index
    %c5_134 = arith.constant 5 : index
    %269 = memref.load %arg4[%c0_133, %c5_134] : memref<4x6xf32, #tpu.memory_space<smem>>
    %270 = vector.broadcast %269 : f32 to vector<8x128xf32>
    %271 = arith.mulf %249, %270 : vector<8x128xf32>
    %272 = arith.addf %268, %271 : vector<8x128xf32>
    %c0_135 = arith.constant 0 : index
    %273 = memref.load %arg5[%c0_135] : memref<4xf32, #tpu.memory_space<smem>>
    %274 = vector.broadcast %273 : f32 to vector<8x128xf32>
    %275 = arith.addf %272, %274 : vector<8x128xf32>
    %276 = arith.negf %275 : vector<8x128xf32>
    %277 = math.exp %276 : vector<8x128xf32>
    %cst_136 = arith.constant 1.000000e+00 : f32
    %278 = vector.broadcast %cst_136 : f32 to vector<8x128xf32>
    %279 = arith.addf %278, %277 : vector<8x128xf32>
    %280 = arith.divf %278, %279 : vector<8x128xf32>
    %c1_137 = arith.constant 1 : index
    %c0_138 = arith.constant 0 : index
    %281 = memref.load %arg4[%c1_137, %c0_138] : memref<4x6xf32, #tpu.memory_space<smem>>
    %282 = vector.broadcast %281 : f32 to vector<8x128xf32>
    %283 = arith.mulf %54, %282 : vector<8x128xf32>
    %c1_139 = arith.constant 1 : index
    %c1_140 = arith.constant 1 : index
    %284 = memref.load %arg4[%c1_139, %c1_140] : memref<4x6xf32, #tpu.memory_space<smem>>
    %285 = vector.broadcast %284 : f32 to vector<8x128xf32>
    %286 = arith.mulf %93, %285 : vector<8x128xf32>
    %287 = arith.addf %283, %286 : vector<8x128xf32>
    %c1_141 = arith.constant 1 : index
    %c2_142 = arith.constant 2 : index
    %288 = memref.load %arg4[%c1_141, %c2_142] : memref<4x6xf32, #tpu.memory_space<smem>>
    %289 = vector.broadcast %288 : f32 to vector<8x128xf32>
    %290 = arith.mulf %132, %289 : vector<8x128xf32>
    %291 = arith.addf %287, %290 : vector<8x128xf32>
    %c1_143 = arith.constant 1 : index
    %c3_144 = arith.constant 3 : index
    %292 = memref.load %arg4[%c1_143, %c3_144] : memref<4x6xf32, #tpu.memory_space<smem>>
    %293 = vector.broadcast %292 : f32 to vector<8x128xf32>
    %294 = arith.mulf %171, %293 : vector<8x128xf32>
    %295 = arith.addf %291, %294 : vector<8x128xf32>
    %c1_145 = arith.constant 1 : index
    %c4_146 = arith.constant 4 : index
    %296 = memref.load %arg4[%c1_145, %c4_146] : memref<4x6xf32, #tpu.memory_space<smem>>
    %297 = vector.broadcast %296 : f32 to vector<8x128xf32>
    %298 = arith.mulf %210, %297 : vector<8x128xf32>
    %299 = arith.addf %295, %298 : vector<8x128xf32>
    %c1_147 = arith.constant 1 : index
    %c5_148 = arith.constant 5 : index
    %300 = memref.load %arg4[%c1_147, %c5_148] : memref<4x6xf32, #tpu.memory_space<smem>>
    %301 = vector.broadcast %300 : f32 to vector<8x128xf32>
    %302 = arith.mulf %249, %301 : vector<8x128xf32>
    %303 = arith.addf %299, %302 : vector<8x128xf32>
    %c1_149 = arith.constant 1 : index
    %304 = memref.load %arg5[%c1_149] : memref<4xf32, #tpu.memory_space<smem>>
    %305 = vector.broadcast %304 : f32 to vector<8x128xf32>
    %306 = arith.addf %303, %305 : vector<8x128xf32>
    %307 = arith.negf %306 : vector<8x128xf32>
    %308 = math.exp %307 : vector<8x128xf32>
    %cst_150 = arith.constant 1.000000e+00 : f32
    %309 = vector.broadcast %cst_150 : f32 to vector<8x128xf32>
    %310 = arith.addf %309, %308 : vector<8x128xf32>
    %311 = arith.divf %309, %310 : vector<8x128xf32>
    %c2_151 = arith.constant 2 : index
    %c0_152 = arith.constant 0 : index
    %312 = memref.load %arg4[%c2_151, %c0_152] : memref<4x6xf32, #tpu.memory_space<smem>>
    %313 = vector.broadcast %312 : f32 to vector<8x128xf32>
    %314 = arith.mulf %54, %313 : vector<8x128xf32>
    %c2_153 = arith.constant 2 : index
    %c1_154 = arith.constant 1 : index
    %315 = memref.load %arg4[%c2_153, %c1_154] : memref<4x6xf32, #tpu.memory_space<smem>>
    %316 = vector.broadcast %315 : f32 to vector<8x128xf32>
    %317 = arith.mulf %93, %316 : vector<8x128xf32>
    %318 = arith.addf %314, %317 : vector<8x128xf32>
    %c2_155 = arith.constant 2 : index
    %c2_156 = arith.constant 2 : index
    %319 = memref.load %arg4[%c2_155, %c2_156] : memref<4x6xf32, #tpu.memory_space<smem>>
    %320 = vector.broadcast %319 : f32 to vector<8x128xf32>
    %321 = arith.mulf %132, %320 : vector<8x128xf32>
    %322 = arith.addf %318, %321 : vector<8x128xf32>
    %c2_157 = arith.constant 2 : index
    %c3_158 = arith.constant 3 : index
    %323 = memref.load %arg4[%c2_157, %c3_158] : memref<4x6xf32, #tpu.memory_space<smem>>
    %324 = vector.broadcast %323 : f32 to vector<8x128xf32>
    %325 = arith.mulf %171, %324 : vector<8x128xf32>
    %326 = arith.addf %322, %325 : vector<8x128xf32>
    %c2_159 = arith.constant 2 : index
    %c4_160 = arith.constant 4 : index
    %327 = memref.load %arg4[%c2_159, %c4_160] : memref<4x6xf32, #tpu.memory_space<smem>>
    %328 = vector.broadcast %327 : f32 to vector<8x128xf32>
    %329 = arith.mulf %210, %328 : vector<8x128xf32>
    %330 = arith.addf %326, %329 : vector<8x128xf32>
    %c2_161 = arith.constant 2 : index
    %c5_162 = arith.constant 5 : index
    %331 = memref.load %arg4[%c2_161, %c5_162] : memref<4x6xf32, #tpu.memory_space<smem>>
    %332 = vector.broadcast %331 : f32 to vector<8x128xf32>
    %333 = arith.mulf %249, %332 : vector<8x128xf32>
    %334 = arith.addf %330, %333 : vector<8x128xf32>
    %c2_163 = arith.constant 2 : index
    %335 = memref.load %arg5[%c2_163] : memref<4xf32, #tpu.memory_space<smem>>
    %336 = vector.broadcast %335 : f32 to vector<8x128xf32>
    %337 = arith.addf %334, %336 : vector<8x128xf32>
    %338 = arith.negf %337 : vector<8x128xf32>
    %339 = math.exp %338 : vector<8x128xf32>
    %cst_164 = arith.constant 1.000000e+00 : f32
    %340 = vector.broadcast %cst_164 : f32 to vector<8x128xf32>
    %341 = arith.addf %340, %339 : vector<8x128xf32>
    %342 = arith.divf %340, %341 : vector<8x128xf32>
    %c3_165 = arith.constant 3 : index
    %c0_166 = arith.constant 0 : index
    %343 = memref.load %arg4[%c3_165, %c0_166] : memref<4x6xf32, #tpu.memory_space<smem>>
    %344 = vector.broadcast %343 : f32 to vector<8x128xf32>
    %345 = arith.mulf %54, %344 : vector<8x128xf32>
    %c3_167 = arith.constant 3 : index
    %c1_168 = arith.constant 1 : index
    %346 = memref.load %arg4[%c3_167, %c1_168] : memref<4x6xf32, #tpu.memory_space<smem>>
    %347 = vector.broadcast %346 : f32 to vector<8x128xf32>
    %348 = arith.mulf %93, %347 : vector<8x128xf32>
    %349 = arith.addf %345, %348 : vector<8x128xf32>
    %c3_169 = arith.constant 3 : index
    %c2_170 = arith.constant 2 : index
    %350 = memref.load %arg4[%c3_169, %c2_170] : memref<4x6xf32, #tpu.memory_space<smem>>
    %351 = vector.broadcast %350 : f32 to vector<8x128xf32>
    %352 = arith.mulf %132, %351 : vector<8x128xf32>
    %353 = arith.addf %349, %352 : vector<8x128xf32>
    %c3_171 = arith.constant 3 : index
    %c3_172 = arith.constant 3 : index
    %354 = memref.load %arg4[%c3_171, %c3_172] : memref<4x6xf32, #tpu.memory_space<smem>>
    %355 = vector.broadcast %354 : f32 to vector<8x128xf32>
    %356 = arith.mulf %171, %355 : vector<8x128xf32>
    %357 = arith.addf %353, %356 : vector<8x128xf32>
    %c3_173 = arith.constant 3 : index
    %c4_174 = arith.constant 4 : index
    %358 = memref.load %arg4[%c3_173, %c4_174] : memref<4x6xf32, #tpu.memory_space<smem>>
    %359 = vector.broadcast %358 : f32 to vector<8x128xf32>
    %360 = arith.mulf %210, %359 : vector<8x128xf32>
    %361 = arith.addf %357, %360 : vector<8x128xf32>
    %c3_175 = arith.constant 3 : index
    %c5_176 = arith.constant 5 : index
    %362 = memref.load %arg4[%c3_175, %c5_176] : memref<4x6xf32, #tpu.memory_space<smem>>
    %363 = vector.broadcast %362 : f32 to vector<8x128xf32>
    %364 = arith.mulf %249, %363 : vector<8x128xf32>
    %365 = arith.addf %361, %364 : vector<8x128xf32>
    %c3_177 = arith.constant 3 : index
    %366 = memref.load %arg5[%c3_177] : memref<4xf32, #tpu.memory_space<smem>>
    %367 = vector.broadcast %366 : f32 to vector<8x128xf32>
    %368 = arith.addf %365, %367 : vector<8x128xf32>
    %369 = arith.negf %368 : vector<8x128xf32>
    %370 = math.exp %369 : vector<8x128xf32>
    %cst_178 = arith.constant 1.000000e+00 : f32
    %371 = vector.broadcast %cst_178 : f32 to vector<8x128xf32>
    %372 = arith.addf %371, %370 : vector<8x128xf32>
    %373 = arith.divf %371, %372 : vector<8x128xf32>
    %c0_179 = arith.constant 0 : index
    %c0_180 = arith.constant 0 : index
    %374 = memref.load %arg6[%c0_179, %c0_180] : memref<2x4xf32, #tpu.memory_space<smem>>
    %375 = vector.broadcast %374 : f32 to vector<8x128xf32>
    %376 = arith.mulf %280, %375 : vector<8x128xf32>
    %c0_181 = arith.constant 0 : index
    %c1_182 = arith.constant 1 : index
    %377 = memref.load %arg6[%c0_181, %c1_182] : memref<2x4xf32, #tpu.memory_space<smem>>
    %378 = vector.broadcast %377 : f32 to vector<8x128xf32>
    %379 = arith.mulf %311, %378 : vector<8x128xf32>
    %380 = arith.addf %376, %379 : vector<8x128xf32>
    %c0_183 = arith.constant 0 : index
    %c2_184 = arith.constant 2 : index
    %381 = memref.load %arg6[%c0_183, %c2_184] : memref<2x4xf32, #tpu.memory_space<smem>>
    %382 = vector.broadcast %381 : f32 to vector<8x128xf32>
    %383 = arith.mulf %342, %382 : vector<8x128xf32>
    %384 = arith.addf %380, %383 : vector<8x128xf32>
    %c0_185 = arith.constant 0 : index
    %c3_186 = arith.constant 3 : index
    %385 = memref.load %arg6[%c0_185, %c3_186] : memref<2x4xf32, #tpu.memory_space<smem>>
    %386 = vector.broadcast %385 : f32 to vector<8x128xf32>
    %387 = arith.mulf %373, %386 : vector<8x128xf32>
    %388 = arith.addf %384, %387 : vector<8x128xf32>
    %c0_187 = arith.constant 0 : index
    %389 = memref.load %arg7[%c0_187] : memref<2xf32, #tpu.memory_space<smem>>
    %390 = vector.broadcast %389 : f32 to vector<8x128xf32>
    %391 = arith.addf %388, %390 : vector<8x128xf32>
    %392 = arith.negf %391 : vector<8x128xf32>
    %393 = math.exp %392 : vector<8x128xf32>
    %cst_188 = arith.constant 1.000000e+00 : f32
    %394 = vector.broadcast %cst_188 : f32 to vector<8x128xf32>
    %395 = arith.addf %394, %393 : vector<8x128xf32>
    %396 = arith.divf %394, %395 : vector<8x128xf32>
    %c1_189 = arith.constant 1 : index
    %c0_190 = arith.constant 0 : index
    %397 = memref.load %arg6[%c1_189, %c0_190] : memref<2x4xf32, #tpu.memory_space<smem>>
    %398 = vector.broadcast %397 : f32 to vector<8x128xf32>
    %399 = arith.mulf %280, %398 : vector<8x128xf32>
    %c1_191 = arith.constant 1 : index
    %c1_192 = arith.constant 1 : index
    %400 = memref.load %arg6[%c1_191, %c1_192] : memref<2x4xf32, #tpu.memory_space<smem>>
    %401 = vector.broadcast %400 : f32 to vector<8x128xf32>
    %402 = arith.mulf %311, %401 : vector<8x128xf32>
    %403 = arith.addf %399, %402 : vector<8x128xf32>
    %c1_193 = arith.constant 1 : index
    %c2_194 = arith.constant 2 : index
    %404 = memref.load %arg6[%c1_193, %c2_194] : memref<2x4xf32, #tpu.memory_space<smem>>
    %405 = vector.broadcast %404 : f32 to vector<8x128xf32>
    %406 = arith.mulf %342, %405 : vector<8x128xf32>
    %407 = arith.addf %403, %406 : vector<8x128xf32>
    %c1_195 = arith.constant 1 : index
    %c3_196 = arith.constant 3 : index
    %408 = memref.load %arg6[%c1_195, %c3_196] : memref<2x4xf32, #tpu.memory_space<smem>>
    %409 = vector.broadcast %408 : f32 to vector<8x128xf32>
    %410 = arith.mulf %373, %409 : vector<8x128xf32>
    %411 = arith.addf %407, %410 : vector<8x128xf32>
    %c1_197 = arith.constant 1 : index
    %412 = memref.load %arg7[%c1_197] : memref<2xf32, #tpu.memory_space<smem>>
    %413 = vector.broadcast %412 : f32 to vector<8x128xf32>
    %414 = arith.addf %411, %413 : vector<8x128xf32>
    %415 = arith.negf %414 : vector<8x128xf32>
    %416 = math.exp %415 : vector<8x128xf32>
    %cst_198 = arith.constant 1.000000e+00 : f32
    %417 = vector.broadcast %cst_198 : f32 to vector<8x128xf32>
    %418 = arith.addf %417, %416 : vector<8x128xf32>
    %419 = arith.divf %417, %418 : vector<8x128xf32>
    %c0_199 = arith.constant 0 : index
    %c0_200 = arith.constant 0 : index
    %420 = memref.load %arg8[%c0_199, %c0_200] : memref<1x2xf32, #tpu.memory_space<smem>>
    %421 = vector.broadcast %420 : f32 to vector<8x128xf32>
    %422 = arith.mulf %396, %421 : vector<8x128xf32>
    %c0_201 = arith.constant 0 : index
    %c1_202 = arith.constant 1 : index
    %423 = memref.load %arg8[%c0_201, %c1_202] : memref<1x2xf32, #tpu.memory_space<smem>>
    %424 = vector.broadcast %423 : f32 to vector<8x128xf32>
    %425 = arith.mulf %419, %424 : vector<8x128xf32>
    %426 = arith.addf %422, %425 : vector<8x128xf32>
    %c0_203 = arith.constant 0 : index
    %427 = memref.load %arg9[%c0_203] : memref<1xf32, #tpu.memory_space<smem>>
    %428 = vector.broadcast %427 : f32 to vector<8x128xf32>
    %429 = arith.addf %426, %428 : vector<8x128xf32>
    %430 = arith.negf %429 : vector<8x128xf32>
    %431 = math.exp %430 : vector<8x128xf32>
    %cst_204 = arith.constant 1.000000e+00 : f32
    %432 = vector.broadcast %cst_204 : f32 to vector<8x128xf32>
    %433 = arith.addf %432, %431 : vector<8x128xf32>
    %434 = arith.divf %432, %433 : vector<8x128xf32>
    %c0_205 = arith.constant 0 : index
    %c0_206 = arith.constant 0 : index
    %435 = vector.load %arg10[%c0_205, %c0_206] : memref<8x128xf32, #tpu.memory_space<vmem>>, vector<8x128xf32>
    tpu.vector_store %arg10[%c0_205, %c0_206], %434 {strides = array<i32>} : memref<8x128xf32, #tpu.memory_space<vmem>>, vector<8x128xf32>,
    return
  }
  func.func @transform_0(%arg0: i32) -> (i32, i32, i32) {
    %c0_i32 = arith.constant 0 : i32
    %c0_i32_0 = arith.constant 0 : i32
    %c0_i32_1 = arith.constant 0 : i32
    return %c0_i32, %arg0, %c0_i32_0 : i32, i32, i32
  }
  func.func @transform_1(%arg0: i32) -> (i32, i32) {
    %c0_i32 = arith.constant 0 : i32
    %c0_i32_0 = arith.constant 0 : i32
    %c0_i32_1 = arith.constant 0 : i32
    return %c0_i32, %c0_i32_0 : i32, i32
  }
  func.func @transform_2(%arg0: i32) -> i32 {
    %c0_i32 = arith.constant 0 : i32
    %c0_i32_0 = arith.constant 0 : i32
    return %c0_i32 : i32
  }
  func.func @transform_3(%arg0: i32) -> (i32, i32) {
    %c0_i32 = arith.constant 0 : i32
    %c0_i32_0 = arith.constant 0 : i32
    %c0_i32_1 = arith.constant 0 : i32
    return %c0_i32, %c0_i32_0 : i32, i32
  }
  func.func @transform_4(%arg0: i32) -> i32 {
    %c0_i32 = arith.constant 0 : i32
    %c0_i32_0 = arith.constant 0 : i32
    return %c0_i32 : i32
  }
  func.func @transform_5(%arg0: i32) -> (i32, i32) {
    %c0_i32 = arith.constant 0 : i32
    %c0_i32_0 = arith.constant 0 : i32
    %c0_i32_1 = arith.constant 0 : i32
    return %c0_i32, %c0_i32_0 : i32, i32
  }
  func.func @transform_6(%arg0: i32) -> i32 {
    %c0_i32 = arith.constant 0 : i32
    %c0_i32_0 = arith.constant 0 : i32
    return %c0_i32 : i32
  }
  func.func @transform_7(%arg0: i32) -> (i32, i32) {
    %c0_i32 = arith.constant 0 : i32
    %c0_i32_0 = arith.constant 0 : i32
    %c0_i32_1 = arith.constant 0 : i32
    return %c0_i32, %c0_i32_0 : i32, i32
  }
  func.func @transform_8(%arg0: i32) -> i32 {
    %c0_i32 = arith.constant 0 : i32
    %c0_i32_0 = arith.constant 0 : i32
    return %c0_i32 : i32
  }
  func.func @transform_9(%arg0: i32) -> (i32, i32) {
    %c0_i32 = arith.constant 0 : i32
    %c0_i32_0 = arith.constant 0 : i32
    return %arg0, %c0_i32 : i32, i32
  }
}

</mosaic_0001>

<llo_original>
// kernel: mlp_forward.1
$region0: #{mlp_forward.1}
  #allocation0 [shape = 'u32[]', space=smem, size = 0x4, offset = 0x4, fixed_abs, tag = 'smem constant byte address 0x4 - core index']
  #allocation1 [shape = 'u32[72,128]{1,0:T(1,128)}', space=vmem, size = 0x9000, scoped, tag = 'internal scratch']
  #allocation2 [shape = 'f32[1]{0:T(128)S(6)}', space=smem, size = 0x200, scoped, tag = 'scoped memory for mlp_forward.1']
  %s0 = inlined_call_operand.vmem [shape: f32[8,8,128], index: 0, kind: input, shape index: {}]
  %s1 = inlined_call_operand.vmem [shape: f32[6,8], index: 1, kind: input, shape index: {}]
  %s2 = inlined_call_operand.vmem [shape: f32[6], index: 2, kind: input, shape index: {}]
  %s3 = inlined_call_operand.vmem [shape: f32[4,6], index: 3, kind: input, shape index: {}]
  %s4 = inlined_call_operand.vmem [shape: f32[4], index: 4, kind: input, shape index: {}]
  %s5 = inlined_call_operand.vmem [shape: f32[2,4], index: 5, kind: input, shape index: {}]
  %s6 = inlined_call_operand.vmem [shape: f32[2], index: 6, kind: input, shape index: {}]
  %s7 = inlined_call_operand.vmem [shape: f32[1,2], index: 7, kind: input, shape index: {}]
  %s8 = inlined_call_operand.<no memory space> [shape: f32[1], index: 8, kind: input, shape index: {}]
  %s9 = inlined_call_operand.vmem [shape: f32[8,128], index: 9, kind: output, shape index: {}]
  %s10 = sld [smem:[#allocation0]]
  $region74: #{mlp_forward.1} parent=0
    _
  %s12 = ssub.s32 1, %s10
  %s13 = scalar_select 0, %s12, %s10
  %14 = sst [smem:[#allocation2]] %s8
  $region1: #{mlp_forward.1} parent=0
    #allocation3 [shape = 'u8[4096]{0}', space=smem, size = 0x1000, scoped, tag = 'input window, operand 1, single buffered']
    #allocation4 [shape = 's32[1]{0}', space=sflag, size = 0x4, scoped, tag = 'scoped memory for mlp_forward.1']
    #allocation5 [shape = 'u8[512]{0}', space=smem, size = 0x200, scoped, tag = 'input window, operand 2, single buffered']
    #allocation6 [shape = 's32[1]{0}', space=sflag, size = 0x4, scoped, tag = 'scoped memory for mlp_forward.1']
    #allocation7 [shape = 'u8[2048]{0}', space=smem, size = 0x800, scoped, tag = 'input window, operand 3, single buffered']
    #allocation8 [shape = 'u8[512]{0}', space=smem, size = 0x200, scoped, tag = 'input window, operand 4, single buffered']
    #allocation9 [shape = 's32[1]{0}', space=sflag, size = 0x4, scoped, tag = 'scoped memory for mlp_forward.1']
    #allocation10 [shape = 'u8[1024]{0}', space=smem, size = 0x400, scoped, tag = 'input window, operand 5, single buffered']
    #allocation11 [shape = 'u8[512]{0}', space=smem, size = 0x200, scoped, tag = 'input window, operand 6, single buffered']
    #allocation12 [shape = 's32[1]{0}', space=sflag, size = 0x4, scoped, tag = 'scoped memory for mlp_forward.1']
    #allocation13 [shape = 'u8[512]{0}', space=smem, size = 0x200, scoped, tag = 'input window, operand 7, single buffered']
    %15 = vsyncpa [#allocation4], 0
    %16 = vsyncpa [#allocation6], 0
    %17 = vsyncpa [#allocation9], 0
    %18 = vsyncpa [#allocation12], 0
    // Predicated region
    $region2: #{mlp_forward.1} parent=1 // pred_check
      _
    $region3: #{mlp_forward.1} parent=1 // pred_check_branch
      %20 = sbr.rel (0) target = $region5
    $region4: #{mlp_forward.1} parent=1 // pred_region
      _
    $region5: #{mlp_forward.1} parent=1 // pred_fallthru
      _
    // Predicated region
    $region6: #{mlp_forward.1} parent=1 // pred_check
      _
    $region7: #{mlp_forward.1} parent=1 // pred_check_branch
      %22 = sbr.rel (0) target = $region9
    $region8: #{mlp_forward.1} parent=1 // pred_region
      %24 = vsyncadd [#allocation4], 0
      %s26 = sshll.u32 %s1, 4
      %s27 = int_to_ptr.vmem [resolvable:$true] %s26
      %29 = dma.vmem_to_smem %s27, 128, [#allocation3], [#allocation4]
    $region9: #{mlp_forward.1} parent=1 // pred_fallthru
      _
    // Predicated region
    $region10: #{mlp_forward.1} parent=1 // pred_check
      _
    $region11: #{mlp_forward.1} parent=1 // pred_check_branch
      %31 = sbr.rel (0) target = $region13
    $region12: #{mlp_forward.1} parent=1 // pred_region
      %33 = vsyncadd [#allocation6], 0
      %s35 = sshll.u32 %s2, 4
      %s36 = int_to_ptr.vmem [resolvable:$true] %s35
      %38 = dma.vmem_to_smem %s36, 16, [#allocation5], [#allocation6]
    $region13: #{mlp_forward.1} parent=1 // pred_fallthru
      _
    // Predicated region
    $region14: #{mlp_forward.1} parent=1 // pred_check
      _
    $region15: #{mlp_forward.1} parent=1 // pred_check_branch
      %40 = sbr.rel (0) target = $region17
    $region16: #{mlp_forward.1} parent=1 // pred_region
      %42 = vsyncadd [#allocation6], 0
      %s44 = sshll.u32 %s3, 4
      %s45 = int_to_ptr.vmem [resolvable:$true] %s44
      %47 = dma.vmem_to_smem %s45, 64, [#allocation7], [#allocation6]
    $region17: #{mlp_forward.1} parent=1 // pred_fallthru
      _
    // Predicated region
    $region18: #{mlp_forward.1} parent=1 // pred_check
      _
    $region19: #{mlp_forward.1} parent=1 // pred_check_branch
      %49 = sbr.rel (0) target = $region21
    $region20: #{mlp_forward.1} parent=1 // pred_region
      %51 = vsyncadd [#allocation9], 0
      %s53 = sshll.u32 %s4, 4
      %s54 = int_to_ptr.vmem [resolvable:$true] %s53
      %56 = dma.vmem_to_smem %s54, 16, [#allocation8], [#allocation9]
    $region21: #{mlp_forward.1} parent=1 // pred_fallthru
      _
    // Predicated region
    $region22: #{mlp_forward.1} parent=1 // pred_check
      _
    $region23: #{mlp_forward.1} parent=1 // pred_check_branch
      %58 = sbr.rel (0) target = $region25
    $region24: #{mlp_forward.1} parent=1 // pred_region
      %60 = vsyncadd [#allocation9], 0
      %s62 = sshll.u32 %s5, 4
      %s63 = int_to_ptr.vmem [resolvable:$true] %s62
      %65 = dma.vmem_to_smem %s63, 32, [#allocation10], [#allocation9]
    $region25: #{mlp_forward.1} parent=1 // pred_fallthru
      _
    // Predicated region
    $region26: #{mlp_forward.1} parent=1 // pred_check
      _
    $region27: #{mlp_forward.1} parent=1 // pred_check_branch
      %67 = sbr.rel (0) target = $region29
    $region28: #{mlp_forward.1} parent=1 // pred_region
      %69 = vsyncadd [#allocation12], 0
      %s71 = sshll.u32 %s6, 4
      %s72 = int_to_ptr.vmem [resolvable:$true] %s71
      %74 = dma.vmem_to_smem %s72, 16, [#allocation11], [#allocation12]
    $region29: #{mlp_forward.1} parent=1 // pred_fallthru
      _
    // Predicated region
    $region30: #{mlp_forward.1} parent=1 // pred_check
      _
    $region31: #{mlp_forward.1} parent=1 // pred_check_branch
      %76 = sbr.rel (0) target = $region33
    $region32: #{mlp_forward.1} parent=1 // pred_region
      %78 = vsyncadd [#allocation12], 0
      %s80 = sshll.u32 %s7, 4
      %s81 = int_to_ptr.vmem [resolvable:$true] %s80
      %83 = dma.vmem_to_smem %s81, 16, [#allocation13], [#allocation12]
    $region33: #{mlp_forward.1} parent=1 // pred_fallthru
      _
    // Predicated region
    $region34: #{mlp_forward.1} parent=1 // pred_check
      _
    $region35: #{mlp_forward.1} parent=1 // pred_check_branch
      %85 = sbr.rel (0) target = $region37
    $region36: #{mlp_forward.1} parent=1 // pred_region
      _
    $region37: #{mlp_forward.1} parent=1 // pred_fallthru
      _
    // Predicated region
    $region38: #{mlp_forward.1} parent=1 // pred_check
      _
    $region39: #{mlp_forward.1} parent=1 // pred_check_branch
      %87 = sbr.rel (0) target = $region41
    $region40: #{mlp_forward.1} parent=1 // pred_region
      %89 = dma.done [#allocation4], 128
    $region41: #{mlp_forward.1} parent=1 // pred_fallthru
      _
    // Predicated region
    $region42: #{mlp_forward.1} parent=1 // pred_check
      _
    $region43: #{mlp_forward.1} parent=1 // pred_check_branch
      %91 = sbr.rel (0) target = $region45
    $region44: #{mlp_forward.1} parent=1 // pred_region
      %93 = dma.done [#allocation6], 16
    $region45: #{mlp_forward.1} parent=1 // pred_fallthru
      _
    // Predicated region
    $region46: #{mlp_forward.1} parent=1 // pred_check
      _
    $region47: #{mlp_forward.1} parent=1 // pred_check_branch
      %95 = sbr.rel (0) target = $region49
    $region48: #{mlp_forward.1} parent=1 // pred_region
      %97 = dma.done [#allocation6], 64
    $region49: #{mlp_forward.1} parent=1 // pred_fallthru
      _
    // Predicated region
    $region50: #{mlp_forward.1} parent=1 // pred_check
      _
    $region51: #{mlp_forward.1} parent=1 // pred_check_branch
      %99 = sbr.rel (0) target = $region53
    $region52: #{mlp_forward.1} parent=1 // pred_region
      %101 = dma.done [#allocation9], 16
    $region53: #{mlp_forward.1} parent=1 // pred_fallthru
      _
    // Predicated region
    $region54: #{mlp_forward.1} parent=1 // pred_check
      _
    $region55: #{mlp_forward.1} parent=1 // pred_check_branch
      %103 = sbr.rel (0) target = $region57
    $region56: #{mlp_forward.1} parent=1 // pred_region
      %105 = dma.done [#allocation9], 32
    $region57: #{mlp_forward.1} parent=1 // pred_fallthru
      _
    // Predicated region
    $region58: #{mlp_forward.1} parent=1 // pred_check
      _
    $region59: #{mlp_forward.1} parent=1 // pred_check_branch
      %107 = sbr.rel (0) target = $region61
    $region60: #{mlp_forward.1} parent=1 // pred_region
      %109 = dma.done [#allocation12], 16
    $region61: #{mlp_forward.1} parent=1 // pred_fallthru
      _
    // Predicated region
    $region62: #{mlp_forward.1} parent=1 // pred_check
      _
    $region63: #{mlp_forward.1} parent=1 // pred_check_branch
      %111 = sbr.rel (0) target = $region65
    $region64: #{mlp_forward.1} parent=1 // pred_region
      %113 = dma.done [#allocation12], 16
    $region65: #{mlp_forward.1} parent=1 // pred_fallthru
      _
    %114 = sfence
    %v115 = vld [vmem:[%s0] sm:$0xff]
    %s116 = scalar_lea.vmem %s0, 8
    %v117 = vld [vmem:[%s116] sm:$0xff]
    %s118 = scalar_lea.vmem %s0, 16
    %v119 = vld [vmem:[%s118] sm:$0xff]
    %s120 = scalar_lea.vmem %s0, 24
    %v121 = vld [vmem:[%s120] sm:$0xff]
    %s122 = scalar_lea.vmem %s0, 32
    %v123 = vld [vmem:[%s122] sm:$0xff]
    %s124 = scalar_lea.vmem %s0, 40
    %v125 = vld [vmem:[%s124] sm:$0xff]
    %s126 = scalar_lea.vmem %s0, 48
    %v127 = vld [vmem:[%s126] sm:$0xff]
    %s128 = scalar_lea.vmem %s0, 56
    %v129 = vld [vmem:[%s128] sm:$0xff]
    %s130 = sld [smem:[#allocation3]]
    %v131 = vstv %s130
    %v132 = vmul.f32 %v115, %v131
    %s133 = sld [smem:[#allocation3 + $0x1]]
    %v134 = vstv %s133
    %v135 = vmul.f32 %v117, %v134
    %v136 = vadd.f32 %v132, %v135
    %s137 = sld [smem:[#allocation3 + $0x2]]
    %v138 = vstv %s137
    %v139 = vmul.f32 %v119, %v138
    %v140 = vadd.f32 %v136, %v139
    %s141 = sld [smem:[#allocation3 + $0x3]]
    %v142 = vstv %s141
    %v143 = vmul.f32 %v121, %v142
    %v144 = vadd.f32 %v140, %v143
    %s145 = sld [smem:[#allocation3 + $0x4]]
    %v146 = vstv %s145
    %v147 = vmul.f32 %v123, %v146
    %v148 = vadd.f32 %v144, %v147
    %s149 = sld [smem:[#allocation3 + $0x5]]
    %v150 = vstv %s149
    %v151 = vmul.f32 %v125, %v150
    %v152 = vadd.f32 %v148, %v151
    %s153 = sld [smem:[#allocation3 + $0x6]]
    %v154 = vstv %s153
    %v155 = vmul.f32 %v127, %v154
    %v156 = vadd.f32 %v152, %v155
    %s157 = sld [smem:[#allocation3 + $0x7]]
    %v158 = vstv %s157
    %v159 = vmul.f32 %v129, %v158
    %v160 = vadd.f32 %v156, %v159
    %s161 = sld [smem:[#allocation5]]
    %v162 = vstv %s161
    %v163 = vadd.f32 %v160, %v162
    %v164 = vxor.u32 %v163, 2147483648
    %v165 = vmul.f32 %v164, 1.442695
    %v166 = vpow.pop %v165
    %v167 = vadd.f32 %v166, 1.0
    %v168 = vrcp.pop %v167
    %v169 = vmul.f32 %v167, %v168
    %v170 = vsub.f32 1.0, %v169
    %v171 = vmul.f32 %v168, %v170
    %v172 = vadd.f32 %v168, %v171
    %vm173 = vweird.f32 %v167
    %vm174 = vweird.f32 %v168
    %vm175 = vmor %vm173, %vm174
    %v176 = vsel %vm175, %v168, %v172
    %v177 = vand.u32 2147483647, %v167
    %vm178 = vcmp.eq.f32.partialorder %v177, 8.507059e+37
    %v179 = vand.u32 %v167, 2147483648
    %v180 = vor.u32 1.1754944e-38, %v179
    %v181 = vsel %vm178, %v180, %v176
    %v182 = vmul.f32 1.0, %v181
    %s183 = sld [smem:[#allocation3 + $0x80]]
    %v184 = vstv %s183
    %v185 = vmul.f32 %v115, %v184
    %s186 = sld [smem:[#allocation3 + $0x81]]
    %v187 = vstv %s186
    %v188 = vmul.f32 %v117, %v187
    %v189 = vadd.f32 %v185, %v188
    %s190 = sld [smem:[#allocation3 + $0x82]]
    %v191 = vstv %s190
    %v192 = vmul.f32 %v119, %v191
    %v193 = vadd.f32 %v189, %v192
    %s194 = sld [smem:[#allocation3 + $0x83]]
    %v195 = vstv %s194
    %v196 = vmul.f32 %v121, %v195
    %v197 = vadd.f32 %v193, %v196
    %s198 = sld [smem:[#allocation3 + $0x84]]
    %v199 = vstv %s198
    %v200 = vmul.f32 %v123, %v199
    %v201 = vadd.f32 %v197, %v200
    %s202 = sld [smem:[#allocation3 + $0x85]]
    %v203 = vstv %s202
    %v204 = vmul.f32 %v125, %v203
    %v205 = vadd.f32 %v201, %v204
    %s206 = sld [smem:[#allocation3 + $0x86]]
    %v207 = vstv %s206
    %v208 = vmul.f32 %v127, %v207
    %v209 = vadd.f32 %v205, %v208
    %s210 = sld [smem:[#allocation3 + $0x87]]
    %v211 = vstv %s210
    %v212 = vmul.f32 %v129, %v211
    %v213 = vadd.f32 %v209, %v212
    %s214 = sld [smem:[#allocation5 + $0x1]]
    %v215 = vstv %s214
    %v216 = vadd.f32 %v213, %v215
    %v217 = vxor.u32 %v216, 2147483648
    %v218 = vmul.f32 %v217, 1.442695
    %v219 = vpow.pop %v218
    %v220 = vadd.f32 %v219, 1.0
    %v221 = vrcp.pop %v220
    %v222 = vmul.f32 %v220, %v221
    %v223 = vsub.f32 1.0, %v222
    %v224 = vmul.f32 %v221, %v223
    %v225 = vadd.f32 %v221, %v224
    %vm226 = vweird.f32 %v220
    %vm227 = vweird.f32 %v221
    %vm228 = vmor %vm226, %vm227
    %v229 = vsel %vm228, %v221, %v225
    %v230 = vand.u32 2147483647, %v220
    %vm231 = vcmp.eq.f32.partialorder %v230, 8.507059e+37
    %v232 = vand.u32 %v220, 2147483648
    %v233 = vor.u32 1.1754944e-38, %v232
    %v234 = vsel %vm231, %v233, %v229
    %v235 = vmul.f32 1.0, %v234
    %s236 = sld [smem:[#allocation3 + $0x100]]
    %v237 = vstv %s236
    %v238 = vmul.f32 %v115, %v237
    %s239 = sld [smem:[#allocation3 + $0x101]]
    %v240 = vstv %s239
    %v241 = vmul.f32 %v117, %v240
    %v242 = vadd.f32 %v238, %v241
    %s243 = sld [smem:[#allocation3 + $0x102]]
    %v244 = vstv %s243
    %v245 = vmul.f32 %v119, %v244
    %v246 = vadd.f32 %v242, %v245
    %s247 = sld [smem:[#allocation3 + $0x103]]
    %v248 = vstv %s247
    %v249 = vmul.f32 %v121, %v248
    %v250 = vadd.f32 %v246, %v249
    %s251 = sld [smem:[#allocation3 + $0x104]]
    %v252 = vstv %s251
    %v253 = vmul.f32 %v123, %v252
    %v254 = vadd.f32 %v250, %v253
    %s255 = sld [smem:[#allocation3 + $0x105]]
    %v256 = vstv %s255
    %v257 = vmul.f32 %v125, %v256
    %v258 = vadd.f32 %v254, %v257
    %s259 = sld [smem:[#allocation3 + $0x106]]
    %v260 = vstv %s259
    %v261 = vmul.f32 %v127, %v260
    %v262 = vadd.f32 %v258, %v261
    %s263 = sld [smem:[#allocation3 + $0x107]]
    %v264 = vstv %s263
    %v265 = vmul.f32 %v129, %v264
    %v266 = vadd.f32 %v262, %v265
    %s267 = sld [smem:[#allocation5 + $0x2]]
    %v268 = vstv %s267
    %v269 = vadd.f32 %v266, %v268
    %v270 = vxor.u32 %v269, 2147483648
    %v271 = vmul.f32 %v270, 1.442695
    %v272 = vpow.pop %v271
    %v273 = vadd.f32 %v272, 1.0
    %v274 = vrcp.pop %v273
    %v275 = vmul.f32 %v273, %v274
    %v276 = vsub.f32 1.0, %v275
    %v277 = vmul.f32 %v274, %v276
    %v278 = vadd.f32 %v274, %v277
    %vm279 = vweird.f32 %v273
    %vm280 = vweird.f32 %v274
    %vm281 = vmor %vm279, %vm280
    %v282 = vsel %vm281, %v274, %v278
    %v283 = vand.u32 2147483647, %v273
    %vm284 = vcmp.eq.f32.partialorder %v283, 8.507059e+37
    %v285 = vand.u32 %v273, 2147483648
    %v286 = vor.u32 1.1754944e-38, %v285
    %v287 = vsel %vm284, %v286, %v282
    %v288 = vmul.f32 1.0, %v287
    %s289 = sld [smem:[#allocation3 + $0x180]]
    %v290 = vstv %s289
    %v291 = vmul.f32 %v115, %v290
    %s292 = sld [smem:[#allocation3 + $0x181]]
    %v293 = vstv %s292
    %v294 = vmul.f32 %v117, %v293
    %v295 = vadd.f32 %v291, %v294
    %s296 = sld [smem:[#allocation3 + $0x182]]
    %v297 = vstv %s296
    %v298 = vmul.f32 %v119, %v297
    %v299 = vadd.f32 %v295, %v298
    %s300 = sld [smem:[#allocation3 + $0x183]]
    %v301 = vstv %s300
    %v302 = vmul.f32 %v121, %v301
    %v303 = vadd.f32 %v299, %v302
    %s304 = sld [smem:[#allocation3 + $0x184]]
    %v305 = vstv %s304
    %v306 = vmul.f32 %v123, %v305
    %v307 = vadd.f32 %v303, %v306
    %s308 = sld [smem:[#allocation3 + $0x185]]
    %v309 = vstv %s308
    %v310 = vmul.f32 %v125, %v309
    %v311 = vadd.f32 %v307, %v310
    %s312 = sld [smem:[#allocation3 + $0x186]]
    %v313 = vstv %s312
    %v314 = vmul.f32 %v127, %v313
    %v315 = vadd.f32 %v311, %v314
    %s316 = sld [smem:[#allocation3 + $0x187]]
    %v317 = vstv %s316
    %v318 = vmul.f32 %v129, %v317
    %v319 = vadd.f32 %v315, %v318
    %s320 = sld [smem:[#allocation5 + $0x3]]
    %v321 = vstv %s320
    %v322 = vadd.f32 %v319, %v321
    %v323 = vxor.u32 %v322, 2147483648
    %v324 = vmul.f32 %v323, 1.442695
    %v325 = vpow.pop %v324
    %v326 = vadd.f32 %v325, 1.0
    %v327 = vrcp.pop %v326
    %v328 = vmul.f32 %v326, %v327
    %v329 = vsub.f32 1.0, %v328
    %v330 = vmul.f32 %v327, %v329
    %v331 = vadd.f32 %v327, %v330
    %vm332 = vweird.f32 %v326
    %vm333 = vweird.f32 %v327
    %vm334 = vmor %vm332, %vm333
    %v335 = vsel %vm334, %v327, %v331
    %v336 = vand.u32 2147483647, %v326
    %vm337 = vcmp.eq.f32.partialorder %v336, 8.507059e+37
    %v338 = vand.u32 %v326, 2147483648
    %v339 = vor.u32 1.1754944e-38, %v338
    %v340 = vsel %vm337, %v339, %v335
    %v341 = vmul.f32 1.0, %v340
    %s342 = sld [smem:[#allocation3 + $0x200]]
    %v343 = vstv %s342
    %v344 = vmul.f32 %v115, %v343
    %s345 = sld [smem:[#allocation3 + $0x201]]
    %v346 = vstv %s345
    %v347 = vmul.f32 %v117, %v346
    %v348 = vadd.f32 %v344, %v347
    %s349 = sld [smem:[#allocation3 + $0x202]]
    %v350 = vstv %s349
    %v351 = vmul.f32 %v119, %v350
    %v352 = vadd.f32 %v348, %v351
    %s353 = sld [smem:[#allocation3 + $0x203]]
    %v354 = vstv %s353
    %v355 = vmul.f32 %v121, %v354
    %v356 = vadd.f32 %v352, %v355
    %s357 = sld [smem:[#allocation3 + $0x204]]
    %v358 = vstv %s357
    %v359 = vmul.f32 %v123, %v358
    %v360 = vadd.f32 %v356, %v359
    %s361 = sld [smem:[#allocation3 + $0x205]]
    %v362 = vstv %s361
    %v363 = vmul.f32 %v125, %v362
    %v364 = vadd.f32 %v360, %v363
    %s365 = sld [smem:[#allocation3 + $0x206]]
    %v366 = vstv %s365
    %v367 = vmul.f32 %v127, %v366
    %v368 = vadd.f32 %v364, %v367
    %s369 = sld [smem:[#allocation3 + $0x207]]
    %v370 = vstv %s369
    %v371 = vmul.f32 %v129, %v370
    %v372 = vadd.f32 %v368, %v371
    %s373 = sld [smem:[#allocation5 + $0x4]]
    %v374 = vstv %s373
    %v375 = vadd.f32 %v372, %v374
    %v376 = vxor.u32 %v375, 2147483648
    %v377 = vmul.f32 %v376, 1.442695
    %v378 = vpow.pop %v377
    %v379 = vadd.f32 %v378, 1.0
    %v380 = vrcp.pop %v379
    %v381 = vmul.f32 %v379, %v380
    %v382 = vsub.f32 1.0, %v381
    %v383 = vmul.f32 %v380, %v382
    %v384 = vadd.f32 %v380, %v383
    %vm385 = vweird.f32 %v379
    %vm386 = vweird.f32 %v380
    %vm387 = vmor %vm385, %vm386
    %v388 = vsel %vm387, %v380, %v384
    %v389 = vand.u32 2147483647, %v379
    %vm390 = vcmp.eq.f32.partialorder %v389, 8.507059e+37
    %v391 = vand.u32 %v379, 2147483648
    %v392 = vor.u32 1.1754944e-38, %v391
    %v393 = vsel %vm390, %v392, %v388
    %v394 = vmul.f32 1.0, %v393
    %s395 = sld [smem:[#allocation3 + $0x280]]
    %v396 = vstv %s395
    %v397 = vmul.f32 %v115, %v396
    %s398 = sld [smem:[#allocation3 + $0x281]]
    %v399 = vstv %s398
    %v400 = vmul.f32 %v117, %v399
    %v401 = vadd.f32 %v397, %v400
    %s402 = sld [smem:[#allocation3 + $0x282]]
    %v403 = vstv %s402
    %v404 = vmul.f32 %v119, %v403
    %v405 = vadd.f32 %v401, %v404
    %s406 = sld [smem:[#allocation3 + $0x283]]
    %v407 = vstv %s406
    %v408 = vmul.f32 %v121, %v407
    %v409 = vadd.f32 %v405, %v408
    %s410 = sld [smem:[#allocation3 + $0x284]]
    %v411 = vstv %s410
    %v412 = vmul.f32 %v123, %v411
    %v413 = vadd.f32 %v409, %v412
    %s414 = sld [smem:[#allocation3 + $0x285]]
    %v415 = vstv %s414
    %v416 = vmul.f32 %v125, %v415
    %v417 = vadd.f32 %v413, %v416
    %s418 = sld [smem:[#allocation3 + $0x286]]
    %v419 = vstv %s418
    %v420 = vmul.f32 %v127, %v419
    %v421 = vadd.f32 %v417, %v420
    %s422 = sld [smem:[#allocation3 + $0x287]]
    %v423 = vstv %s422
    %v424 = vmul.f32 %v129, %v423
    %v425 = vadd.f32 %v421, %v424
    %s426 = sld [smem:[#allocation5 + $0x5]]
    %v427 = vstv %s426
    %v428 = vadd.f32 %v425, %v427
    %v429 = vxor.u32 %v428, 2147483648
    %v430 = vmul.f32 %v429, 1.442695
    %v431 = vpow.pop %v430
    %v432 = vadd.f32 %v431, 1.0
    %v433 = vrcp.pop %v432
    %v434 = vmul.f32 %v432, %v433
    %v435 = vsub.f32 1.0, %v434
    %v436 = vmul.f32 %v433, %v435
    %v437 = vadd.f32 %v433, %v436
    %vm438 = vweird.f32 %v432
    %vm439 = vweird.f32 %v433
    %vm440 = vmor %vm438, %vm439
    %v441 = vsel %vm440, %v433, %v437
    %v442 = vand.u32 2147483647, %v432
    %vm443 = vcmp.eq.f32.partialorder %v442, 8.507059e+37
    %v444 = vand.u32 %v432, 2147483648
    %v445 = vor.u32 1.1754944e-38, %v444
    %v446 = vsel %vm443, %v445, %v441
    %v447 = vmul.f32 1.0, %v446
    %s448 = sld [smem:[#allocation7]]
    %v449 = vstv %s448
    %v450 = vmul.f32 %v182, %v449
    %s451 = sld [smem:[#allocation7 + $0x1]]
    %v452 = vstv %s451
    %v453 = vmul.f32 %v235, %v452
    %v454 = vadd.f32 %v450, %v453
    %s455 = sld [smem:[#allocation7 + $0x2]]
    %v456 = vstv %s455
    %v457 = vmul.f32 %v288, %v456
    %v458 = vadd.f32 %v454, %v457
    %s459 = sld [smem:[#allocation7 + $0x3]]
    %v460 = vstv %s459
    %v461 = vmul.f32 %v341, %v460
    %v462 = vadd.f32 %v458, %v461
    %s463 = sld [smem:[#allocation7 + $0x4]]
    %v464 = vstv %s463
    %v465 = vmul.f32 %v394, %v464
    %v466 = vadd.f32 %v462, %v465
    %s467 = sld [smem:[#allocation7 + $0x5]]
    %v468 = vstv %s467
    %v469 = vmul.f32 %v447, %v468
    %v470 = vadd.f32 %v466, %v469
    %s471 = sld [smem:[#allocation8]]
    %v472 = vstv %s471
    %v473 = vadd.f32 %v470, %v472
    %v474 = vxor.u32 %v473, 2147483648
    %v475 = vmul.f32 %v474, 1.442695
    %v476 = vpow.pop %v475
    %v477 = vadd.f32 %v476, 1.0
    %v478 = vrcp.pop %v477
    %v479 = vmul.f32 %v477, %v478
    %v480 = vsub.f32 1.0, %v479
    %v481 = vmul.f32 %v478, %v480
    %v482 = vadd.f32 %v478, %v481
    %vm483 = vweird.f32 %v477
    %vm484 = vweird.f32 %v478
    %vm485 = vmor %vm483, %vm484
    %v486 = vsel %vm485, %v478, %v482
    %v487 = vand.u32 2147483647, %v477
    %vm488 = vcmp.eq.f32.partialorder %v487, 8.507059e+37
    %v489 = vand.u32 %v477, 2147483648
    %v490 = vor.u32 1.1754944e-38, %v489
    %v491 = vsel %vm488, %v490, %v486
    %v492 = vmul.f32 1.0, %v491
    %s493 = sld [smem:[#allocation7 + $0x80]]
    %v494 = vstv %s493
    %v495 = vmul.f32 %v182, %v494
    %s496 = sld [smem:[#allocation7 + $0x81]]
    %v497 = vstv %s496
    %v498 = vmul.f32 %v235, %v497
    %v499 = vadd.f32 %v495, %v498
    %s500 = sld [smem:[#allocation7 + $0x82]]
    %v501 = vstv %s500
    %v502 = vmul.f32 %v288, %v501
    %v503 = vadd.f32 %v499, %v502
    %s504 = sld [smem:[#allocation7 + $0x83]]
    %v505 = vstv %s504
    %v506 = vmul.f32 %v341, %v505
    %v507 = vadd.f32 %v503, %v506
    %s508 = sld [smem:[#allocation7 + $0x84]]
    %v509 = vstv %s508
    %v510 = vmul.f32 %v394, %v509
    %v511 = vadd.f32 %v507, %v510
    %s512 = sld [smem:[#allocation7 + $0x85]]
    %v513 = vstv %s512
    %v514 = vmul.f32 %v447, %v513
    %v515 = vadd.f32 %v511, %v514
    %s516 = sld [smem:[#allocation8 + $0x1]]
    %v517 = vstv %s516
    %v518 = vadd.f32 %v515, %v517
    %v519 = vxor.u32 %v518, 2147483648
    %v520 = vmul.f32 %v519, 1.442695
    %v521 = vpow.pop %v520
    %v522 = vadd.f32 %v521, 1.0
    %v523 = vrcp.pop %v522
    %v524 = vmul.f32 %v522, %v523
    %v525 = vsub.f32 1.0, %v524
    %v526 = vmul.f32 %v523, %v525
    %v527 = vadd.f32 %v523, %v526
    %vm528 = vweird.f32 %v522
    %vm529 = vweird.f32 %v523
    %vm530 = vmor %vm528, %vm529
    %v531 = vsel %vm530, %v523, %v527
    %v532 = vand.u32 2147483647, %v522
    %vm533 = vcmp.eq.f32.partialorder %v532, 8.507059e+37
    %v534 = vand.u32 %v522, 2147483648
    %v535 = vor.u32 1.1754944e-38, %v534
    %v536 = vsel %vm533, %v535, %v531
    %v537 = vmul.f32 1.0, %v536
    %s538 = sld [smem:[#allocation7 + $0x100]]
    %v539 = vstv %s538
    %v540 = vmul.f32 %v182, %v539
    %s541 = sld [smem:[#allocation7 + $0x101]]
    %v542 = vstv %s541
    %v543 = vmul.f32 %v235, %v542
    %v544 = vadd.f32 %v540, %v543
    %s545 = sld [smem:[#allocation7 + $0x102]]
    %v546 = vstv %s545
    %v547 = vmul.f32 %v288, %v546
    %v548 = vadd.f32 %v544, %v547
    %s549 = sld [smem:[#allocation7 + $0x103]]
    %v550 = vstv %s549
    %v551 = vmul.f32 %v341, %v550
    %v552 = vadd.f32 %v548, %v551
    %s553 = sld [smem:[#allocation7 + $0x104]]
    %v554 = vstv %s553
    %v555 = vmul.f32 %v394, %v554
    %v556 = vadd.f32 %v552, %v555
    %s557 = sld [smem:[#allocation7 + $0x105]]
    %v558 = vstv %s557
    %v559 = vmul.f32 %v447, %v558
    %v560 = vadd.f32 %v556, %v559
    %s561 = sld [smem:[#allocation8 + $0x2]]
    %v562 = vstv %s561
    %v563 = vadd.f32 %v560, %v562
    %v564 = vxor.u32 %v563, 2147483648
    %v565 = vmul.f32 %v564, 1.442695
    %v566 = vpow.pop %v565
    %v567 = vadd.f32 %v566, 1.0
    %v568 = vrcp.pop %v567
    %v569 = vmul.f32 %v567, %v568
    %v570 = vsub.f32 1.0, %v569
    %v571 = vmul.f32 %v568, %v570
    %v572 = vadd.f32 %v568, %v571
    %vm573 = vweird.f32 %v567
    %vm574 = vweird.f32 %v568
    %vm575 = vmor %vm573, %vm574
    %v576 = vsel %vm575, %v568, %v572
    %v577 = vand.u32 2147483647, %v567
    %vm578 = vcmp.eq.f32.partialorder %v577, 8.507059e+37
    %v579 = vand.u32 %v567, 2147483648
    %v580 = vor.u32 1.1754944e-38, %v579
    %v581 = vsel %vm578, %v580, %v576
    %v582 = vmul.f32 1.0, %v581
    %s583 = sld [smem:[#allocation7 + $0x180]]
    %v584 = vstv %s583
    %v585 = vmul.f32 %v182, %v584
    %s586 = sld [smem:[#allocation7 + $0x181]]
    %v587 = vstv %s586
    %v588 = vmul.f32 %v235, %v587
    %v589 = vadd.f32 %v585, %v588
    %s590 = sld [smem:[#allocation7 + $0x182]]
    %v591 = vstv %s590
    %v592 = vmul.f32 %v288, %v591
    %v593 = vadd.f32 %v589, %v592
    %s594 = sld [smem:[#allocation7 + $0x183]]
    %v595 = vstv %s594
    %v596 = vmul.f32 %v341, %v595
    %v597 = vadd.f32 %v593, %v596
    %s598 = sld [smem:[#allocation7 + $0x184]]
    %v599 = vstv %s598
    %v600 = vmul.f32 %v394, %v599
    %v601 = vadd.f32 %v597, %v600
    %s602 = sld [smem:[#allocation7 + $0x185]]
    %v603 = vstv %s602
    %v604 = vmul.f32 %v447, %v603
    %v605 = vadd.f32 %v601, %v604
    %s606 = sld [smem:[#allocation8 + $0x3]]
    %v607 = vstv %s606
    %v608 = vadd.f32 %v605, %v607
    %v609 = vxor.u32 %v608, 2147483648
    %v610 = vmul.f32 %v609, 1.442695
    %v611 = vpow.pop %v610
    %v612 = vadd.f32 %v611, 1.0
    %v613 = vrcp.pop %v612
    %v614 = vmul.f32 %v612, %v613
    %v615 = vsub.f32 1.0, %v614
    %v616 = vmul.f32 %v613, %v615
    %v617 = vadd.f32 %v613, %v616
    %vm618 = vweird.f32 %v612
    %vm619 = vweird.f32 %v613
    %vm620 = vmor %vm618, %vm619
    %v621 = vsel %vm620, %v613, %v617
    %v622 = vand.u32 2147483647, %v612
    %vm623 = vcmp.eq.f32.partialorder %v622, 8.507059e+37
    %v624 = vand.u32 %v612, 2147483648
    %v625 = vor.u32 1.1754944e-38, %v624
    %v626 = vsel %vm623, %v625, %v621
    %v627 = vmul.f32 1.0, %v626
    %s628 = sld [smem:[#allocation10]]
    %v629 = vstv %s628
    %v630 = vmul.f32 %v492, %v629
    %s631 = sld [smem:[#allocation10 + $0x1]]
    %v632 = vstv %s631
    %v633 = vmul.f32 %v537, %v632
    %v634 = vadd.f32 %v630, %v633
    %s635 = sld [smem:[#allocation10 + $0x2]]
    %v636 = vstv %s635
    %v637 = vmul.f32 %v582, %v636
    %v638 = vadd.f32 %v634, %v637
    %s639 = sld [smem:[#allocation10 + $0x3]]
    %v640 = vstv %s639
    %v641 = vmul.f32 %v627, %v640
    %v642 = vadd.f32 %v638, %v641
    %s643 = sld [smem:[#allocation11]]
    %v644 = vstv %s643
    %v645 = vadd.f32 %v642, %v644
    %v646 = vxor.u32 %v645, 2147483648
    %v647 = vmul.f32 %v646, 1.442695
    %v648 = vpow.pop %v647
    %v649 = vadd.f32 %v648, 1.0
    %v650 = vrcp.pop %v649
    %v651 = vmul.f32 %v649, %v650
    %v652 = vsub.f32 1.0, %v651
    %v653 = vmul.f32 %v650, %v652
    %v654 = vadd.f32 %v650, %v653
    %vm655 = vweird.f32 %v649
    %vm656 = vweird.f32 %v650
    %vm657 = vmor %vm655, %vm656
    %v658 = vsel %vm657, %v650, %v654
    %v659 = vand.u32 2147483647, %v649
    %vm660 = vcmp.eq.f32.partialorder %v659, 8.507059e+37
    %v661 = vand.u32 %v649, 2147483648
    %v662 = vor.u32 1.1754944e-38, %v661
    %v663 = vsel %vm660, %v662, %v658
    %v664 = vmul.f32 1.0, %v663
    %s665 = sld [smem:[#allocation10 + $0x80]]
    %v666 = vstv %s665
    %v667 = vmul.f32 %v492, %v666
    %s668 = sld [smem:[#allocation10 + $0x81]]
    %v669 = vstv %s668
    %v670 = vmul.f32 %v537, %v669
    %v671 = vadd.f32 %v667, %v670
    %s672 = sld [smem:[#allocation10 + $0x82]]
    %v673 = vstv %s672
    %v674 = vmul.f32 %v582, %v673
    %v675 = vadd.f32 %v671, %v674
    %s676 = sld [smem:[#allocation10 + $0x83]]
    %v677 = vstv %s676
    %v678 = vmul.f32 %v627, %v677
    %v679 = vadd.f32 %v675, %v678
    %s680 = sld [smem:[#allocation11 + $0x1]]
    %v681 = vstv %s680
    %v682 = vadd.f32 %v679, %v681
    %v683 = vxor.u32 %v682, 2147483648
    %v684 = vmul.f32 %v683, 1.442695
    %v685 = vpow.pop %v684
    %v686 = vadd.f32 %v685, 1.0
    %v687 = vrcp.pop %v686
    %v688 = vmul.f32 %v686, %v687
    %v689 = vsub.f32 1.0, %v688
    %v690 = vmul.f32 %v687, %v689
    %v691 = vadd.f32 %v687, %v690
    %vm692 = vweird.f32 %v686
    %vm693 = vweird.f32 %v687
    %vm694 = vmor %vm692, %vm693
    %v695 = vsel %vm694, %v687, %v691
    %v696 = vand.u32 2147483647, %v686
    %vm697 = vcmp.eq.f32.partialorder %v696, 8.507059e+37
    %v698 = vand.u32 %v686, 2147483648
    %v699 = vor.u32 1.1754944e-38, %v698
    %v700 = vsel %vm697, %v699, %v695
    %v701 = vmul.f32 1.0, %v700
    %s702 = sld [smem:[#allocation13]]
    %v703 = vstv %s702
    %v704 = vmul.f32 %v664, %v703
    %s705 = sld [smem:[#allocation13 + $0x1]]
    %v706 = vstv %s705
    %v707 = vmul.f32 %v701, %v706
    %v708 = vadd.f32 %v704, %v707
    %s709 = sld [smem:[#allocation2]]
    %v710 = vstv %s709
    %v711 = vadd.f32 %v708, %v710
    %v712 = vxor.u32 %v711, 2147483648
    %v713 = vmul.f32 %v712, 1.442695
    %v714 = vpow.pop %v713
    %v715 = vadd.f32 %v714, 1.0
    %v716 = vrcp.pop %v715
    %v717 = vmul.f32 %v715, %v716
    %v718 = vsub.f32 1.0, %v717
    %v719 = vmul.f32 %v716, %v718
    %v720 = vadd.f32 %v716, %v719
    %vm721 = vweird.f32 %v715
    %vm722 = vweird.f32 %v716
    %vm723 = vmor %vm721, %vm722
    %v724 = vsel %vm723, %v716, %v720
    %v725 = vand.u32 2147483647, %v715
    %vm726 = vcmp.eq.f32.partialorder %v725, 8.507059e+37
    %v727 = vand.u32 %v715, 2147483648
    %v728 = vor.u32 1.1754944e-38, %v727
    %v729 = vsel %vm726, %v728, %v724
    %v730 = vmul.f32 1.0, %v729
    %731 = vst [vmem:[%s9] sm:$0xff] %v730
    // Predicated region
    $region66: #{mlp_forward.1} parent=1 // pred_check
      _
    $region67: #{mlp_forward.1} parent=1 // pred_check_branch
      %733 = sbr.rel (0) target = $region69
    $region68: #{mlp_forward.1} parent=1 // pred_region
      _
    $region69: #{mlp_forward.1} parent=1 // pred_fallthru
      _
    // Predicated region
    $region70: #{mlp_forward.1} parent=1 // pred_check
      _
    $region71: #{mlp_forward.1} parent=1 // pred_check_branch
      %735 = sbr.rel (0) target = $region73
    $region72: #{mlp_forward.1} parent=1 // pred_region
      _
    $region73: #{mlp_forward.1} parent=1 // pred_fallthru
      _
    %736 = vsyncpa [#allocation4], 1
    %737 = vsyncpa [#allocation6], 1
    %738 = vsyncpa [#allocation9], 1
    %739 = vsyncpa [#allocation12], 1

</llo_original>
